<compile_context>
chip_gen: v6e
topology: v6e:2x2x1
jax: 0.10.0
libtpu: 0.0.40
codegen_flags: <defaults>
</compile_context>

<pallas_src>
import jax
import jax.numpy as jnp
from jax.experimental import pallas as pl
from jax.experimental.pallas import tpu as pltpu

LANES = 128
SUBLANES = 8
MAX_BLOCK_ROWS = 8192                      # 1024 (8,128) groups -> 4 MiB f32 per input block
_PALLAS_MIN_BYTES = 4 * 1024 * 1024        # below this, fused XLA wins (launch overhead)


def _ceil_div(a, b):
    return -(-a // b)


def _round_up(a, b):
    return _ceil_div(a, b) * b


def _device_kind():
    try:
        return jax.devices()[0].device_kind.lower()
    except Exception:
        return ""


def _make_mse_kernel(rows, block_rows, inner_steps):
    groups = block_rows // SUBLANES

    def kernel(o_ref, t_ref, out_ref):
        c = pl.program_id(0)
        i = pl.program_id(1)

        @pl.when(i == 0)
        def _():
            out_ref[...] = jnp.zeros_like(out_ref)

        # Keep the subtraction in f32 (bf16 cancellation would bias the MSE);
        # bf16 inputs still stream at half the HBM bytes since the cast is
        # in-kernel.
        d = t_ref[...].astype(jnp.float32) - o_ref[...].astype(jnp.float32)
        sq = d * d                                      # (block_rows, 128) f32
        sq3 = sq.reshape(groups, SUBLANES, LANES)       # layout-preserving split

        # Rows of real data remaining at this block's start.  Over-run blocks
        # (only possible with the 2-way core split) have row_rem <= 0; the
        # (possibly) ragged last block has 0 < row_rem < block_rows.
        b = c * inner_steps + i
        row_rem = rows - b * block_rows

        # Fast path (every block but at most one per core): plain vector fold
        # into the VMEM-resident output block — no iota/compare/select.
        @pl.when(row_rem >= block_rows)
        def _():
            out_ref[0] += jnp.sum(sq3, axis=0)

        # Slow path (ragged last block only): mask rows past the real data
        # before folding.  Garbage in out-of-bounds rows cannot propagate
        # because jnp.where selects elementwise.
        @pl.when(jnp.logical_and(row_rem > 0, row_rem < block_rows))
        def _():
            r_ids = jax.lax.broadcasted_iota(jnp.int32, sq.shape, 0)
            masked = jnp.where(r_ids < row_rem, sq, 0.0)
            out_ref[0] += jnp.sum(masked.reshape(groups, SUBLANES, LANES), axis=0)

        # Note: if a v7x bf16 profile still shows VALU-bound steps, the axis-0
        # fold can be offloaded to the MXU via a ones-row matmul over
        # (block_rows, 128); unnecessary for f32 (HBM-bound).

    return kernel


def sim_loss_pallas(output, target):
    """MSE loss mean((target - output)**2), always via the Pallas kernel."""
    assert output.shape == target.shape, (output.shape, target.shape)
    n_elems = int(output.size)
    assert n_elems > 0

    o = output.reshape(-1)
    t = target.reshape(-1)

    # Copy-free 2-D view when n is a multiple of 128 (the common case).  Only
    # a sub-128-element ragged tail forces a small pad (rare; one extra pass).
    tail_pad = (-n_elems) % LANES
    if tail_pad:
        o = jnp.pad(o, (0, tail_pad))
        t = jnp.pad(t, (0, tail_pad))
    rows = (n_elems + tail_pad) // LANES

    o2 = o.reshape(rows, LANES)
    t2 = t.reshape(rows, LANES)

    kind = _device_kind()
    is_v7 = "v7" in kind
    num_splits = 2 if is_v7 else 1           # 2 TensorCores per chip on v7x only

    block_rows = min(MAX_BLOCK_ROWS, _round_up(rows, SUBLANES))
    total_blocks = _ceil_div(rows, block_rows)
    inner_steps = _ceil_div(total_blocks, num_splits)

    def in_map(c, i):
        # Clamp so over-run blocks (from the core split) still DMA in bounds;
        # their contribution is skipped inside the kernel (row_rem <= 0).
        return (jnp.minimum(c * inner_steps + i, total_blocks - 1), 0)

    core_par = getattr(pltpu, "CORE_PARALLEL", None)
    arb = getattr(pltpu, "ARBITRARY", "arbitrary")
    if num_splits == 2 and core_par is not None:
        dim_sem = (core_par, arb)            # make the 2-TC split explicit on v7x
    else:
        dim_sem = ("arbitrary", "arbitrary")

    partials = pl.pallas_call(
        _make_mse_kernel(rows, block_rows, inner_steps),
        out_shape=jax.ShapeDtypeStruct((num_splits, SUBLANES, LANES), jnp.float32),
        grid_spec=pltpu.PrefetchScalarGridSpec(
            num_scalar_prefetch=0,
            grid=(num_splits, inner_steps),
            in_specs=[
                pl.BlockSpec((block_rows, LANES), in_map),
                pl.BlockSpec((block_rows, LANES), in_map),
            ],
            out_specs=pl.BlockSpec((1, SUBLANES, LANES), lambda c, i: (c, 0, 0)),
        ),
        compiler_params=pltpu.CompilerParams(
            dimension_semantics=dim_sem,
            # 16 MiB of double-buffered input blocks + headroom; keep modest on
            # v7x (64 MiB physical VMEM), roomier on v5e/v6e (128 MiB).
            vmem_limit_bytes=(32 if is_v7 else 64) * 1024 * 1024,
        ),
    )(o2, t2)

    # One tiny final cross-lane reduce (num_splits*8*128 elements) + exact mean.
    # (f32 cast of n_elems is inexact above 2^24; irrelevant at these tolerances.)
    return jnp.sum(partials) / jnp.float32(n_elems)


def sim_loss(output, target):
    """Public entry point matching torch SimLoss.forward.

    Tiny inputs use a fused XLA reduction (pallas_call launch overhead
    dominates there); everything else streams through the Pallas kernel.
    """
    nbytes = (output.size * jnp.dtype(output.dtype).itemsize
              + target.size * jnp.dtype(target.dtype).itemsize)
    if nbytes < _PALLAS_MIN_BYTES:
        d = target.astype(jnp.float32) - output.astype(jnp.float32)
        return jnp.mean(d * d)
    return sim_loss_pallas(output, target)


if __name__ == "__main__":
    key = jax.random.PRNGKey(0)
    k1, k2, k3, k4 = jax.random.split(key, 4)

    # Small (N, C, H, W) registration-style intensity volumes.
    output = jax.random.normal(k1, (2, 4, 16, 16), dtype=jnp.float32)
    target = jax.random.normal(k2, (2, 4, 16, 16), dtype=jnp.float32)
    ref = jnp.mean((target - output) ** 2)

    # Exercise the Pallas kernel directly (the public sim_loss() routes an
    # input this small through the fused-XLA fast path).
    loss_kernel = sim_loss_pallas(output, target)
    jax.block_until_ready(loss_kernel)
    assert jnp.allclose(loss_kernel, ref, rtol=1e-5, atol=1e-6), (loss_kernel, ref)

    # Ragged element count (not a multiple of 1024): exercises the gated
    # in-kernel row mask.
    out_r = jax.random.normal(k3, (2, 4, 15, 15), dtype=jnp.float32)
    tgt_r = jax.random.normal(k4, (2, 4, 15, 15), dtype=jnp.float32)
    ref_r = jnp.mean((tgt_r - out_r) ** 2)
    loss_r = sim_loss_pallas(out_r, tgt_r)
    jax.block_until_ready(loss_r)
    assert jnp.allclose(loss_r, ref_r, rtol=1e-5, atol=1e-6), (loss_r, ref_r)

    # Public dispatcher (tiny-input fast path) must agree as well.
    loss = sim_loss(output, target)
    jax.block_until_ready(loss)
    assert jnp.allclose(loss, ref, rtol=1e-5, atol=1e-6), (loss, ref)

    print("KERNEL_OK")
</pallas_src>

<mosaic_0001>
module attributes {stable_mosaic.version = 11 : i64} {
  func.func @kernel(%arg0: i32, %arg1: i32, %arg2: memref<16x128xf32, #tpu.memory_space<vmem>>, %arg3: memref<16x128xf32, #tpu.memory_space<vmem>>, %arg4: memref<1x8x128xf32, #tpu.memory_space<vmem>>) attributes {dimension_semantics = [#tpu.dimension_semantics<arbitrary>, #tpu.dimension_semantics<arbitrary>], iteration_bounds = array<i64: 1, 1>, scalar_prefetch = 0 : i64, scratch_operands = 0 : i64, tpu.core_type = #tpu.core_type<tc>, window_params = [{transform_indices = @transform_0, window_bounds = array<i64: 16, 128>}, {transform_indices = @transform_1, window_bounds = array<i64: 16, 128>}, {transform_indices = @transform_2, window_bounds = array<i64: 1, 8, 128>}]} {
    %c0_i32 = arith.constant 0 : i32
    %0 = arith.cmpi eq, %arg1, %c0_i32 : i32
    %1 = arith.extui %0 : i1 to i32
    %c0_i32_0 = arith.constant 0 : i32
    %2 = arith.cmpi ne, %1, %c0_i32_0 : i32
    scf.if %2 {
      %cst = arith.constant 0.000000e+00 : f32
      %20 = vector.broadcast %cst : f32 to vector<1x8x128xf32>
      %c0_10 = arith.constant 0 : index
      %c0_11 = arith.constant 0 : index
      %c0_12 = arith.constant 0 : index
      %21 = vector.load %arg4[%c0_10, %c0_11, %c0_12] : memref<1x8x128xf32, #tpu.memory_space<vmem>>, vector<1x8x128xf32>
      tpu.vector_store %arg4[%c0_10, %c0_11, %c0_12], %20 {strides = array<i32>} : memref<1x8x128xf32, #tpu.memory_space<vmem>>, vector<1x8x128xf32>,
    } else {
    }
    %c0 = arith.constant 0 : index
    %c0_1 = arith.constant 0 : index
    %3 = vector.load %arg3[%c0, %c0_1] : memref<16x128xf32, #tpu.memory_space<vmem>>, vector<16x128xf32>
    %c0_2 = arith.constant 0 : index
    %c0_3 = arith.constant 0 : index
    %4 = vector.load %arg2[%c0_2, %c0_3] : memref<16x128xf32, #tpu.memory_space<vmem>>, vector<16x128xf32>
    %5 = arith.subf %3, %4 : vector<16x128xf32>
    %6 = arith.mulf %5, %5 : vector<16x128xf32>
    %7 = vector.shape_cast %6 : vector<16x128xf32> to vector<2x8x128xf32>
    %c1_i32 = arith.constant 1 : i32
    %8 = arith.muli %arg0, %c1_i32 : i32
    %9 = arith.addi %8, %arg1 : i32
    %c16_i32 = arith.constant 16 : i32
    %10 = arith.muli %9, %c16_i32 : i32
    %c16_i32_4 = arith.constant 16 : i32
    %11 = arith.subi %c16_i32_4, %10 : i32
    %c16_i32_5 = arith.constant 16 : i32
    %12 = arith.cmpi sge, %11, %c16_i32_5 : i32
    %13 = arith.extui %12 : i1 to i32
    %c0_i32_6 = arith.constant 0 : i32
    %14 = arith.cmpi ne, %13, %c0_i32_6 : i32
    scf.if %14 {
      %c0_10 = arith.constant 0 : index
      %c0_11 = arith.constant 0 : index
      %c0_12 = arith.constant 0 : index
      %20 = vector.load %arg4[%c0_10, %c0_11, %c0_12] : memref<1x8x128xf32, #tpu.memory_space<vmem>>, vector<1x8x128xf32>
      %21 = vector.shape_cast %20 : vector<1x8x128xf32> to vector<8x128xf32>
      %cst = arith.constant dense<0.000000e+00> : vector<8x128xf32>
      %22 = vector.multi_reduction <add>, %7, %cst [0] : vector<2x8x128xf32> to vector<8x128xf32>
      %23 = arith.addf %21, %22 : vector<8x128xf32>
      %c0_13 = arith.constant 0 : index
      %c0_14 = arith.constant 0 : index
      %c0_15 = arith.constant 0 : index
      %24 = vector.load %arg4[%c0_13, %c0_14, %c0_15] : memref<1x8x128xf32, #tpu.memory_space<vmem>>, vector<1x8x128xf32>
      %25 = vector.shape_cast %24 : vector<1x8x128xf32> to vector<8x128xf32>
      %26 = vector.shape_cast %23 : vector<8x128xf32> to vector<1x8x128xf32>
      tpu.vector_store %arg4[%c0_13, %c0_14, %c0_15], %26 {strides = array<i32>} : memref<1x8x128xf32, #tpu.memory_space<vmem>>, vector<1x8x128xf32>,
    } else {
    }
    %c0_i32_7 = arith.constant 0 : i32
    %15 = arith.cmpi sgt, %11, %c0_i32_7 : i32
    %c16_i32_8 = arith.constant 16 : i32
    %16 = arith.cmpi slt, %11, %c16_i32_8 : i32
    %17 = arith.andi %15, %16 : i1
    %18 = arith.extui %17 : i1 to i32
    %c0_i32_9 = arith.constant 0 : i32
    %19 = arith.cmpi ne, %18, %c0_i32_9 : i32
    scf.if %19 {
      %20 = tpu.iota {dimensions = array<i32: 0>} : vector<16x128xi32>
      %21 = vector.broadcast %11 : i32 to vector<16x128xi32>
      %22 = arith.cmpi slt, %20, %21 : vector<16x128xi32>
      %cst = arith.constant 0.000000e+00 : f32
      %23 = vector.broadcast %cst : f32 to vector<16x128xf32>
      %24 = arith.select %22, %6, %23 : vector<16x128xi1>, vector<16x128xf32>
      %c0_10 = arith.constant 0 : index
      %c0_11 = arith.constant 0 : index
      %c0_12 = arith.constant 0 : index
      %25 = vector.load %arg4[%c0_10, %c0_11, %c0_12] : memref<1x8x128xf32, #tpu.memory_space<vmem>>, vector<1x8x128xf32>
      %26 = vector.shape_cast %25 : vector<1x8x128xf32> to vector<8x128xf32>
      %27 = vector.shape_cast %24 : vector<16x128xf32> to vector<2x8x128xf32>
      %cst_13 = arith.constant dense<0.000000e+00> : vector<8x128xf32>
      %28 = vector.multi_reduction <add>, %27, %cst_13 [0] : vector<2x8x128xf32> to vector<8x128xf32>
      %29 = arith.addf %26, %28 : vector<8x128xf32>
      %c0_14 = arith.constant 0 : index
      %c0_15 = arith.constant 0 : index
      %c0_16 = arith.constant 0 : index
      %30 = vector.load %arg4[%c0_14, %c0_15, %c0_16] : memref<1x8x128xf32, #tpu.memory_space<vmem>>, vector<1x8x128xf32>
      %31 = vector.shape_cast %30 : vector<1x8x128xf32> to vector<8x128xf32>
      %32 = vector.shape_cast %29 : vector<8x128xf32> to vector<1x8x128xf32>
      tpu.vector_store %arg4[%c0_14, %c0_15, %c0_16], %32 {strides = array<i32>} : memref<1x8x128xf32, #tpu.memory_space<vmem>>, vector<1x8x128xf32>,
    } else {
    }
    return
  }
  func.func @transform_0(%arg0: i32, %arg1: i32) -> (i32, i32) {
    %c1_i32 = arith.constant 1 : i32
    %0 = arith.muli %arg0, %c1_i32 : i32
    %1 = arith.addi %0, %arg1 : i32
    %c0_i32 = arith.constant 0 : i32
    %2 = arith.minsi %1, %c0_i32 : i32
    %c0_i32_0 = arith.constant 0 : i32
    %c0_i32_1 = arith.constant 0 : i32
    return %2, %c0_i32_0 : i32, i32
  }
  func.func @transform_1(%arg0: i32, %arg1: i32) -> (i32, i32) {
    %c1_i32 = arith.constant 1 : i32
    %0 = arith.muli %arg0, %c1_i32 : i32
    %1 = arith.addi %0, %arg1 : i32
    %c0_i32 = arith.constant 0 : i32
    %2 = arith.minsi %1, %c0_i32 : i32
    %c0_i32_0 = arith.constant 0 : i32
    %c0_i32_1 = arith.constant 0 : i32
    return %2, %c0_i32_0 : i32, i32
  }
  func.func @transform_2(%arg0: i32, %arg1: i32) -> (i32, i32, i32) {
    %c0_i32 = arith.constant 0 : i32
    %c0_i32_0 = arith.constant 0 : i32
    %c0_i32_1 = arith.constant 0 : i32
    return %arg0, %c0_i32, %c0_i32_0 : i32, i32, i32
  }
}

</mosaic_0001>

<llo_original>
// kernel: tpu_custom_call.1
$region0: #{tpu_custom_call.1}
  #allocation0 [shape = 'u32[]', space=smem, size = 0x4, offset = 0x4, fixed_abs, tag = 'smem constant byte address 0x4 - core index']
  #allocation1 [shape = 'u32[144,128]{1,0:T(1,128)}', space=vmem, size = 0x12000, scoped, tag = 'internal scratch']
  %s0 = inlined_call_operand.hbm [shape: f32[16,128], index: 0, kind: input, shape index: {}]
  %s1 = inlined_call_operand.hbm [shape: f32[16,128], index: 1, kind: input, shape index: {}]
  %s2 = inlined_call_operand.hbm [shape: f32[1,8,128], index: 2, kind: output, shape index: {}]
  %s3 = sld [smem:[#allocation0]]
  $region38: #{tpu_custom_call.1} parent=0
    _
  %s5 = ssub.s32 1, %s3
  %s6 = scalar_select 0, %s5, %s3
  $region1: #{tpu_custom_call.1} parent=0
    #allocation2 [shape = 'u8[8192]{0}', space=vmem, size = 0x2000, scoped, tag = 'input window, operand 0, single buffered']
    #allocation3 [shape = 's32[1]{0}', space=sflag, size = 0x4, scoped, tag = 'scoped memory for tpu_custom_call.1']
    #allocation4 [shape = 's32[1]{0}', space=sflag, size = 0x4, scoped, tag = 'scoped memory for tpu_custom_call.1']
    #allocation5 [shape = 'u8[8192]{0}', space=vmem, size = 0x2000, scoped, tag = 'input window, operand 1, single buffered']
    #allocation6 [shape = 's32[1]{0}', space=sflag, size = 0x4, scoped, tag = 'scoped memory for tpu_custom_call.1']
    #allocation7 [shape = 'u8[4096]{0}', space=vmem, size = 0x1000, scoped, tag = 'output window, operand 0, single buffered']
    %7 = vsyncpa [#allocation3], 0
    %8 = vsyncpa [#allocation6], 0
    %9 = vsyncpa [#allocation4], 0
    // Predicated region
    $region2: #{tpu_custom_call.1} parent=1 // pred_check
      _
    $region3: #{tpu_custom_call.1} parent=1 // pred_check_branch
      %11 = sbr.rel (0) target = $region5
    $region4: #{tpu_custom_call.1} parent=1 // pred_region
      %s12 = sadd.s32 0, 0
      %p13 = scmp.lt.s32.totalorder %s12, 0
      %s14 = scalar_select %p13, %s12, 0
      %s15 = smul.u32 2, %s14
      %s17 = ssub.s32 256, 256
      %18 = vsyncadd [#allocation3], %s17
      %s19 = smul.addr %s15, 128
      %s20 = scalar_lea.hbm %s0, %s19
      %s21 = sshll.u32 [#allocation2], 4
      %s22 = int_to_ptr.vmem [resolvable:$true] %s21
      %27 = dma.hbm_to_vmem [thread:$0]  %s20, 256, %s22, [#allocation3], 128, 128, 8
    $region5: #{tpu_custom_call.1} parent=1 // pred_fallthru
      _
    // Predicated region
    $region6: #{tpu_custom_call.1} parent=1 // pred_check
      _
    $region7: #{tpu_custom_call.1} parent=1 // pred_check_branch
      %29 = sbr.rel (0) target = $region9
    $region8: #{tpu_custom_call.1} parent=1 // pred_region
      %s30 = sadd.s32 0, 0
      %p31 = scmp.lt.s32.totalorder %s30, 0
      %s32 = scalar_select %p31, %s30, 0
      %s33 = smul.u32 2, %s32
      %s35 = ssub.s32 256, 256
      %36 = vsyncadd [#allocation6], %s35
      %s37 = smul.addr %s33, 128
      %s38 = scalar_lea.hbm %s1, %s37
      %s39 = sshll.u32 [#allocation5], 4
      %s40 = int_to_ptr.vmem [resolvable:$true] %s39
      %45 = dma.hbm_to_vmem [thread:$0]  %s38, 256, %s40, [#allocation6], 128, 128, 8
    $region9: #{tpu_custom_call.1} parent=1 // pred_fallthru
      _
    // Predicated region
    $region10: #{tpu_custom_call.1} parent=1 // pred_check
      _
    $region11: #{tpu_custom_call.1} parent=1 // pred_check_branch
      %47 = sbr.rel (0) target = $region13
    $region12: #{tpu_custom_call.1} parent=1 // pred_region
      %48 = dma.done [#allocation3], 256
    $region13: #{tpu_custom_call.1} parent=1 // pred_fallthru
      _
    // Predicated region
    $region14: #{tpu_custom_call.1} parent=1 // pred_check
      _
    $region15: #{tpu_custom_call.1} parent=1 // pred_check_branch
      %50 = sbr.rel (0) target = $region17
    $region16: #{tpu_custom_call.1} parent=1 // pred_region
      %51 = dma.done [#allocation6], 256
    $region17: #{tpu_custom_call.1} parent=1 // pred_fallthru
      _
    %s52 = sadd.s32 0, 0
    %p53 = scmp.lt.s32.totalorder %s52, 0
    %s54 = scalar_select %p53, %s52, 0
    %s55 = smul.u32 2, %s54
    %s56 = sadd.s32 0, 0
    %p57 = scmp.lt.s32.totalorder %s56, 0
    %s58 = scalar_select %p57, %s56, 0
    %s59 = smul.u32 2, %s58
    %p60 = scmp.eq.s32.totalorder 0, 0
    // Predicated region
    $region18: #{tpu_custom_call.1} parent=1 // pred_check
      %p61 = pneg %p60
    $region19: #{tpu_custom_call.1} parent=1 // pred_check_branch
      %63 = sbr.rel (%p61) target = $region21
    $region20: #{tpu_custom_call.1} parent=1 // pred_region
      %64 = vst [vmem:[#allocation7] sm:$0xff] 0.0
    $region21: #{tpu_custom_call.1} parent=1 // pred_fallthru
      _
    %v65 = vld [vmem:[#allocation5] sm:$0xff]
    %v66 = vld [vmem:[#allocation5 + $0x8] sm:$0xff]
    %v67 = vld [vmem:[#allocation2] sm:$0xff]
    %v68 = vld [vmem:[#allocation2 + $0x8] sm:$0xff]
    %v69 = vsub.f32 %v65, %v67
    %v70 = vsub.f32 %v66, %v68
    %v71 = vmul.f32 %v69, %v69
    %v72 = vmul.f32 %v70, %v70
    %s73 = sadd.s32 0, 0
    %s74 = smul.u32 %s73, 16
    %s75 = ssub.s32 16, %s74
    %p76 = scmp.ge.s32.totalorder %s75, 16
    // Predicated region
    $region22: #{tpu_custom_call.1} parent=1 // pred_check
      %p77 = pneg %p76
    $region23: #{tpu_custom_call.1} parent=1 // pred_check_branch
      %79 = sbr.rel (%p77) target = $region25
    $region24: #{tpu_custom_call.1} parent=1 // pred_region
      %v80 = vld [vmem:[#allocation7] sm:$0xff]
      %v81 = vadd.f32 %v71, %v72
      %v82 = vadd.f32 %v80, %v81
      %83 = vst [vmem:[#allocation7] sm:$0xff] %v82
    $region25: #{tpu_custom_call.1} parent=1 // pred_fallthru
      _
    %p84 = scmp.gt.s32.totalorder %s75, 0
    %p85 = scmp.lt.s32.totalorder %s75, 16
    %p86 = pnand %p84, %p85
    %p87 = pneg %p86
    // Predicated region
    $region26: #{tpu_custom_call.1} parent=1 // pred_check
      _
    $region27: #{tpu_custom_call.1} parent=1 // pred_check_branch
      %89 = sbr.rel (%p86) target = $region29
    $region28: #{tpu_custom_call.1} parent=1 // pred_region
      %v90 = vlaneseq
      %v91 = vshrl.u32 %v90, 7
      %v92 = vadd.s32 %v91, 8
      %v93 = vstv %s75
      %vm94 = vcmp.lt.s32.totalorder %v91, %v93
      %vm95 = vcmp.lt.s32.totalorder %v92, %v93
      %v96 = vsel %vm94, %v71, 0.0
      %v97 = vsel %vm95, %v72, 0.0
      %v98 = vld [vmem:[#allocation7] sm:$0xff]
      %v99 = vadd.f32 %v96, %v97
      %v100 = vadd.f32 %v98, %v99
      %101 = vst [vmem:[#allocation7] sm:$0xff] %v100
    $region29: #{tpu_custom_call.1} parent=1 // pred_fallthru
      _
    // Predicated region
    $region30: #{tpu_custom_call.1} parent=1 // pred_check
      _
    $region31: #{tpu_custom_call.1} parent=1 // pred_check_branch
      %103 = sbr.rel (0) target = $region33
    $region32: #{tpu_custom_call.1} parent=1 // pred_region
      %s105 = ssub.s32 128, 128
      %106 = vsyncadd [#allocation4], %s105
      %s108 = sshll.u32 [#allocation7], 4
      %s109 = int_to_ptr.vmem [resolvable:$true] %s108
      %111 = dma.vmem_to_hbm [thread:$0]  %s109, 128, %s2, [#allocation4]
    $region33: #{tpu_custom_call.1} parent=1 // pred_fallthru
      _
    // Predicated region
    $region34: #{tpu_custom_call.1} parent=1 // pred_check
      _
    $region35: #{tpu_custom_call.1} parent=1 // pred_check_branch
      %113 = sbr.rel (0) target = $region37
    $region36: #{tpu_custom_call.1} parent=1 // pred_region
      %114 = dma.done [#allocation4], 128
    $region37: #{tpu_custom_call.1} parent=1 // pred_fallthru
      _
    %115 = vsyncpa [#allocation3], 1
    %116 = vsyncpa [#allocation6], 1
    %117 = vsyncpa [#allocation4], 1

</llo_original>
